<compile_context>
chip_gen: v5e
topology: v5e:2x2
jax: 0.10.0
libtpu: 0.0.40
codegen_flags: <defaults>
</compile_context>

<pallas_src>
import functools

import jax
import jax.numpy as jnp
from jax.experimental import pallas as pl
from jax.experimental.pallas import tpu as pltpu


def gcn_pool_kernel(adj_ref, xe_ref, wt_ref, bw2_ref, wo_ref, bo_ref, out_ref,
                    *, mm_dtype):
    # adj_ref: (Bb, Tn, N)   int8 0/1 adjacency rows for this row-tile
    # xe_ref:  (Bb, N, D+1)  f32, [gcn_inputs | 1] (ones column -> denom on MXU)
    # wt_ref:  (D, D)        f32, weight_list[0].weight pre-transposed (in, out)
    # bw2_ref: (1, D)        f32, 2 * weight_list[0].bias (merged projection)
    # wo_ref:  (1, D)        f32, linear_output.weight row
    # bo_ref:  (1, 1)        f32, linear_output.bias (SMEM)
    # out_ref: (Bb, Tn)      f32, lane-dense output slab
    Bb, Tn, _ = adj_ref.shape
    D = xe_ref.shape[-1] - 1

    row0 = pl.multiple_of(pl.program_id(1) * Tn, Tn)

    # adj @ [x | 1] on the native bf16 MXU path (0/1 adj and the ones column
    # are exact in bf16); f32 accumulation.  Column D of the result is
    # rowsum(adj) = denom - 1 -- no separate XLU reduce, no f32 adj copy.
    adj_mm = adj_ref[...].astype(mm_dtype)
    xe_mm = xe_ref[...].astype(mm_dtype)
    axe = jnp.einsum("bij,bjd->bid", adj_mm, xe_mm,
                     preferred_element_type=jnp.float32)      # (Bb, Tn, D+1)
    Ax = axe[..., :D]                                         # (Bb, Tn, D)
    denom = axe[..., D] + 1.0                                 # (Bb, Tn), exact, >= 1

    # Merged projection input: W(Ax) + W(x) = (Ax + x) @ W^T + 2b.  x stays f32.
    x_rows = xe_ref[:, pl.ds(row0, Tn), :][..., :D]           # (Bb, Tn, D) f32
    s = Ax + x_rows

    # Single 2-D matmul: W^T stays resident on the MXU, no per-batch W copies.
    AxW = jnp.dot(s.reshape(Bb * Tn, D), wt_ref[...],
                  preferred_element_type=jnp.float32).reshape(Bb, Tn, D)
    AxW = AxW + bw2_ref[...]

    # relu; gcn_drop (nn.Dropout) is identity in eval mode.
    # TODO(synk): training-mode dropout (gcn_drop) is not implemented.
    gAxW = jnp.maximum(AxW, 0.0)

    # out = linear_output(gAxW / denom); division hoisted past the relu
    # (denom >= 1) and past the linear head onto the (Bb, Tn) reduced vector.
    red = jnp.sum(gAxW * wo_ref[...], axis=2)                 # VPU mul + XLU reduce
    out_ref[...] = red * pl.reciprocal(denom, approx=True) + bo_ref[0, 0]


def gcn_pool_for_single(adj, gcn_inputs, w, bw, wo, bo, *,
                        block_b=None, tile_n=None,
                        adj_storage_dtype=jnp.int8,
                        x_matmul_dtype=jnp.bfloat16,
                        vmem_budget_bytes=40 * 1024 * 1024):
    """Forward of GCN_Pool_for_Single (layers == 1). Returns (B, N, 1)."""
    B, N, D = gcn_inputs.shape
    assert adj.shape == (B, N, N)

    def _divs(n):
        return [d for d in range(1, n + 1) if n % d == 0]

    adj_bytes = jnp.dtype(adj_storage_dtype).itemsize
    mm_bytes = jnp.dtype(x_matmul_dtype).itemsize

    def _block_bytes(bb, tn):
        adj_blk = bb * tn * N * adj_bytes        # adj block (per pipeline buffer)
        adj_wide = bb * tn * N * mm_bytes        # in-kernel widened adj temp
        x_blk = bb * N * (D + 1) * 4             # f32 [x | 1] block (per buffer)
        inter = 4 * bb * tn * (D + 1) * 4        # Ax / s / AxW / gAxW f32 temps
        w_blk = (D * D + 2 * D + 1) * 4
        out_blk = bb * tn * 4
        return 2 * (adj_blk + x_blk + out_blk + w_blk) + adj_wide + inter

    # Row tile: only needed when a full-N adj block blows the VMEM budget
    # (v7x: 64 MiB/TC).  tile_n must keep the lane-dense (B, N) output block
    # legal: == N or a multiple of 128 (also satisfies the adj sublane rule).
    if tile_n is None:
        tile_n = N
        cand = sorted(t for t in _divs(N) if t % 128 == 0)
        while cand and _block_bytes(1, tile_n) > vmem_budget_bytes:
            smaller = [t for t in cand if t < tile_n]
            if not smaller:
                break
            tile_n = max(smaller)
    assert N % tile_n == 0

    # Batch block: only amortizes the ~0.35us per-grid-step overhead (the 3-D
    # operands' sublane/lane density is set by N and D, not batch).  Pick the
    # largest legal value (== B or a multiple of 8, for the (block_b, tile_n)
    # output block) that fits the budget, preferring >= 2 grid steps so both
    # v7x TensorCores get work and cross-step DMA/compute pipelining exists.
    if block_b is None:
        legal = [d for d in _divs(B) if d == B or d % 8 == 0]
        fitting = [d for d in legal
                   if _block_bytes(d, tile_n) <= vmem_budget_bytes] or [min(legal)]
        pref = [d for d in fitting if B // d >= 2]
        block_b = max(pref) if pref else max(fitting)
    assert B % block_b == 0
    grid = (B // block_b, N // tile_n)

    est = _block_bytes(block_b, tile_n)
    vmem_limit = int(min(max(est + (16 << 20), 32 << 20), 96 << 20))

    # 0/1 dependency adjacency is exact in int8 (and after the in-kernel bf16
    # widen).  A weighted/normalized adjacency would need wider storage here.
    adj_c = adj.astype(adj_storage_dtype)
    x_f32 = gcn_inputs.astype(jnp.float32)
    # Ones column: adj @ [x | 1] yields Ax and rowsum(adj) in one MXU pass.
    x_ext = jnp.concatenate([x_f32, jnp.ones((B, N, 1), jnp.float32)], axis=-1)
    w_t = jnp.transpose(w).astype(jnp.float32)            # (in, out), once, XLA side
    bw2 = (2.0 * bw).reshape(1, D).astype(jnp.float32)    # merged-projection bias
    wo2 = wo.reshape(1, D).astype(jnp.float32)
    bo2 = bo.reshape(1, 1).astype(jnp.float32)

    kernel = functools.partial(gcn_pool_kernel, mm_dtype=x_matmul_dtype)

    out2d = pl.pallas_call(
        kernel,
        out_shape=jax.ShapeDtypeStruct((B, N), jnp.float32),
        grid_spec=pltpu.PrefetchScalarGridSpec(
            num_scalar_prefetch=0,
            grid=grid,
            in_specs=[
                pl.BlockSpec((block_b, tile_n, N), lambda b, n: (b, n, 0)),  # adj (int8)
                pl.BlockSpec((block_b, N, D + 1), lambda b, n: (b, 0, 0)),   # [x | 1]
                pl.BlockSpec((D, D), lambda b, n: (0, 0)),                   # W^T
                pl.BlockSpec((1, D), lambda b, n: (0, 0)),                   # 2 * bias
                pl.BlockSpec((1, D), lambda b, n: (0, 0)),                   # out weight row
                pl.BlockSpec(memory_space=pltpu.MemorySpace.SMEM),           # out bias
            ],
            out_specs=pl.BlockSpec((block_b, tile_n), lambda b, n: (b, n)),
        ),
        compiler_params=pltpu.CompilerParams(
            dimension_semantics=("parallel", "parallel"),
            vmem_limit_bytes=vmem_limit),
    )(adj_c, x_ext, w_t, bw2, wo2, bo2)

    # Restore the PyTorch module's (B, N, 1) output shape outside the kernel.
    return out2d[..., None]


def _reference(adj, x, w, bw, wo, bo):
    denom = jnp.sum(adj, axis=2, keepdims=True) + 1.0
    Ax = jnp.einsum("bij,bjd->bid", adj, x)
    AxW = Ax @ w.T + bw
    AxW = AxW + (x @ w.T + bw)
    AxW = AxW / denom
    gAxW = jax.nn.relu(AxW)
    return gAxW @ wo.T + bo


if __name__ == "__main__":
    # batch, graph nodes (seq length), mem_dim.  B=16 so the batch grid axis
    # actually has 2 steps (block_b=8) and the index maps get exercised.
    B, N, D = 16, 16, 32

    key = jax.random.PRNGKey(0)
    k_adj, k_x, k_w, k_bw, k_wo, k_bo = jax.random.split(key, 6)

    # Synthetic 0/1 adjacency (dependency graph) and feature inputs.
    adj = (jax.random.uniform(k_adj, (B, N, N)) > 0.7).astype(jnp.float32)
    x = jax.random.normal(k_x, (B, N, D), dtype=jnp.float32)

    # nn.Linear-style params: weight (out, in), bias (out,).
    bound_w = 1.0 / jnp.sqrt(D)
    w = jax.random.uniform(k_w, (D, D), minval=-bound_w, maxval=bound_w).astype(jnp.float32)
    bw = jax.random.uniform(k_bw, (D,), minval=-bound_w, maxval=bound_w).astype(jnp.float32)
    wo = jax.random.uniform(k_wo, (1, D), minval=-bound_w, maxval=bound_w).astype(jnp.float32)
    bo = jax.random.uniform(k_bo, (1,), minval=-bound_w, maxval=bound_w).astype(jnp.float32)

    out = gcn_pool_for_single(adj, x, w, bw, wo, bo)
    out = jax.block_until_ready(out)

    ref = _reference(adj, x, w, bw, wo, bo)
    assert out.shape == (B, N, 1)
    # Tolerance loosened vs rev 2: x is cast to bf16 for the adj@x matmul
    # (~4e-3 rel) and the final scaling uses the approx EUP reciprocal.
    assert jnp.allclose(out, ref, atol=2e-2, rtol=2e-2), "mismatch vs reference"

    print("KERNEL_OK")
</pallas_src>

<mosaic_0001>
module attributes {stable_mosaic.version = 11 : i64} {
  func.func @gcn_pool_kernel(%arg0: i32, %arg1: i32, %arg2: memref<8x16x16xi8, #tpu.memory_space<vmem>>, %arg3: memref<8x16x33xf32, #tpu.memory_space<vmem>>, %arg4: memref<32x32xf32, #tpu.memory_space<vmem>>, %arg5: memref<1x32xf32, #tpu.memory_space<vmem>>, %arg6: memref<1x32xf32, #tpu.memory_space<vmem>>, %arg7: memref<1x1xf32, #tpu.memory_space<smem>>, %arg8: memref<8x16xf32, #tpu.memory_space<vmem>>) attributes {dimension_semantics = [#tpu.dimension_semantics<parallel>, #tpu.dimension_semantics<parallel>], iteration_bounds = array<i64: 2, 1>, scalar_prefetch = 0 : i64, scratch_operands = 0 : i64, tpu.core_type = #tpu.core_type<tc>, window_params = [{transform_indices = @transform_0, window_bounds = array<i64: 8, 16, 16>}, {transform_indices = @transform_1, window_bounds = array<i64: 8, 16, 33>}, {pipeline_mode = #tpu.pipeline_mode<synchronous>, transform_indices = @transform_2, window_bounds = array<i64: 32, 32>}, {pipeline_mode = #tpu.pipeline_mode<synchronous>, transform_indices = @transform_3, window_bounds = array<i64: 1, 32>}, {pipeline_mode = #tpu.pipeline_mode<synchronous>, transform_indices = @transform_4, window_bounds = array<i64: 1, 32>}, {transform_indices = @transform_5, window_bounds = array<i64: 1, 1>}, {transform_indices = @transform_6, window_bounds = array<i64: 8, 16>}]} {
    %c16_i32 = arith.constant 16 : i32
    %0 = arith.muli %arg1, %c16_i32 : i32
    %1 = tpu.assume_multiple %0, 16 : i32
    %c0 = arith.constant 0 : index
    %c0_0 = arith.constant 0 : index
    %c0_1 = arith.constant 0 : index
    %2 = vector.load %arg2[%c0, %c0_0, %c0_1] : memref<8x16x16xi8, #tpu.memory_space<vmem>>, vector<8x16x16xi8>
    %3 = arith.sitofp %2 : vector<8x16x16xi8> to vector<8x16x16xbf16>
    %c0_2 = arith.constant 0 : index
    %c0_3 = arith.constant 0 : index
    %c0_4 = arith.constant 0 : index
    %4 = vector.load %arg3[%c0_2, %c0_3, %c0_4] : memref<8x16x33xf32, #tpu.memory_space<vmem>>, vector<8x16x33xf32>
    %5 = arith.truncf %4 : vector<8x16x33xf32> to vector<8x16x33xbf16>
    "tpu.trace_start"() <{level = 10 : i32, message = "bij,bjd->bid"}> : () -> ()
    %cst = arith.constant dense<0.000000e+00> : vector<8x16x33xf32>
    %6 = tpu.matmul %3, %5, %cst {dimension_numbers = #tpu.dot_dimension_numbers<[2], [1], [1], [2], [0, 0, 0, 1, 1, 2], [0], [0]>} : vector<8x16x16xbf16>, vector<8x16x33xbf16>, vector<8x16x33xf32> -> vector<8x16x33xf32>
    "tpu.trace_stop"() : () -> ()
    %7 = vector.extract_strided_slice %6 {offsets = [0, 0, 0], sizes = [8, 16, 32], strides = [1, 1, 1]} : vector<8x16x33xf32> to vector<8x16x32xf32>
    %8 = vector.extract_strided_slice %6 {offsets = [0, 0, 32], sizes = [8, 16, 1], strides = [1, 1, 1]} : vector<8x16x33xf32> to vector<8x16x1xf32>
    %9 = vector.shape_cast %8 : vector<8x16x1xf32> to vector<8x16xf32>
    %cst_5 = arith.constant 1.000000e+00 : f32
    %10 = vector.broadcast %cst_5 : f32 to vector<8x16xf32>
    %11 = arith.addf %9, %10 : vector<8x16xf32>
    %c0_6 = arith.constant 0 : index
    %12 = arith.index_cast %1 : i32 to index
    %c0_7 = arith.constant 0 : index
    %13 = vector.load %arg3[%c0_6, %12, %c0_7] : memref<8x16x33xf32, #tpu.memory_space<vmem>>, vector<8x16x33xf32>
    %14 = vector.extract_strided_slice %13 {offsets = [0, 0, 0], sizes = [8, 16, 32], strides = [1, 1, 1]} : vector<8x16x33xf32> to vector<8x16x32xf32>
    %15 = arith.addf %7, %14 : vector<8x16x32xf32>
    %16 = vector.shape_cast %15 : vector<8x16x32xf32> to vector<128x32xf32>
    %c0_8 = arith.constant 0 : index
    %c0_9 = arith.constant 0 : index
    %17 = vector.load %arg4[%c0_8, %c0_9] : memref<32x32xf32, #tpu.memory_space<vmem>>, vector<32x32xf32>
    %cst_10 = arith.constant dense<0.000000e+00> : vector<128x32xf32>
    %18 = tpu.matmul %16, %17, %cst_10 {dimension_numbers = #tpu.dot_dimension_numbers<[1], [0], [0], [1], [0, 0, 1, 1], [], []>} : vector<128x32xf32>, vector<32x32xf32>, vector<128x32xf32> -> vector<128x32xf32>
    %19 = vector.shape_cast %18 : vector<128x32xf32> to vector<8x16x32xf32>
    %c0_11 = arith.constant 0 : index
    %c0_12 = arith.constant 0 : index
    %20 = vector.load %arg5[%c0_11, %c0_12] : memref<1x32xf32, #tpu.memory_space<vmem>>, vector<1x32xf32>
    %21 = vector.shape_cast %20 : vector<1x32xf32> to vector<1x1x32xf32>
    %22 = vector.broadcast %21 : vector<1x1x32xf32> to vector<8x16x32xf32>
    %23 = arith.addf %19, %22 : vector<8x16x32xf32>
    %cst_13 = arith.constant 0.000000e+00 : f32
    %24 = vector.broadcast %cst_13 : f32 to vector<8x16x32xf32>
    %25 = arith.maximumf %23, %24 : vector<8x16x32xf32>
    %c0_14 = arith.constant 0 : index
    %c0_15 = arith.constant 0 : index
    %26 = vector.load %arg6[%c0_14, %c0_15] : memref<1x32xf32, #tpu.memory_space<vmem>>, vector<1x32xf32>
    %27 = vector.shape_cast %26 : vector<1x32xf32> to vector<1x1x32xf32>
    %28 = vector.broadcast %27 : vector<1x1x32xf32> to vector<8x16x32xf32>
    %29 = arith.mulf %25, %28 : vector<8x16x32xf32>
    %cst_16 = arith.constant dense<0.000000e+00> : vector<8x16xf32>
    %30 = vector.multi_reduction <add>, %29, %cst_16 [2] : vector<8x16x32xf32> to vector<8x16xf32>
    %31 = tpu.reciprocal %11 {approx = true} : vector<8x16xf32> -> vector<8x16xf32>
    %32 = arith.mulf %30, %31 : vector<8x16xf32>
    %c0_17 = arith.constant 0 : index
    %c0_18 = arith.constant 0 : index
    %33 = memref.load %arg7[%c0_17, %c0_18] : memref<1x1xf32, #tpu.memory_space<smem>>
    %34 = vector.broadcast %33 : f32 to vector<8x16xf32>
    %35 = arith.addf %32, %34 : vector<8x16xf32>
    %c0_19 = arith.constant 0 : index
    %c0_20 = arith.constant 0 : index
    %36 = vector.load %arg8[%c0_19, %c0_20] : memref<8x16xf32, #tpu.memory_space<vmem>>, vector<8x16xf32>
    tpu.vector_store %arg8[%c0_19, %c0_20], %35 {strides = array<i32>} : memref<8x16xf32, #tpu.memory_space<vmem>>, vector<8x16xf32>,
    return
  }
  func.func @transform_0(%arg0: i32, %arg1: i32) -> (i32, i32, i32) {
    %c0_i32 = arith.constant 0 : i32
    %c0_i32_0 = arith.constant 0 : i32
    return %arg0, %arg1, %c0_i32 : i32, i32, i32
  }
  func.func @transform_1(%arg0: i32, %arg1: i32) -> (i32, i32, i32) {
    %c0_i32 = arith.constant 0 : i32
    %c0_i32_0 = arith.constant 0 : i32
    %c0_i32_1 = arith.constant 0 : i32
    return %arg0, %c0_i32, %c0_i32_0 : i32, i32, i32
  }
  func.func @transform_2(%arg0: i32, %arg1: i32) -> (i32, i32) {
    %c0_i32 = arith.constant 0 : i32
    %c0_i32_0 = arith.constant 0 : i32
    %c0_i32_1 = arith.constant 0 : i32
    return %c0_i32, %c0_i32_0 : i32, i32
  }
  func.func @transform_3(%arg0: i32, %arg1: i32) -> (i32, i32) {
    %c0_i32 = arith.constant 0 : i32
    %c0_i32_0 = arith.constant 0 : i32
    %c0_i32_1 = arith.constant 0 : i32
    return %c0_i32, %c0_i32_0 : i32, i32
  }
  func.func @transform_4(%arg0: i32, %arg1: i32) -> (i32, i32) {
    %c0_i32 = arith.constant 0 : i32
    %c0_i32_0 = arith.constant 0 : i32
    %c0_i32_1 = arith.constant 0 : i32
    return %c0_i32, %c0_i32_0 : i32, i32
  }
  func.func @transform_5(%arg0: i32, %arg1: i32) -> (i32, i32) {
    %c0_i32 = arith.constant 0 : i32
    %c0_i32_0 = arith.constant 0 : i32
    %c0_i32_1 = arith.constant 0 : i32
    return %c0_i32, %c0_i32_0 : i32, i32
  }
  func.func @transform_6(%arg0: i32, %arg1: i32) -> (i32, i32) {
    %c0_i32 = arith.constant 0 : i32
    return %arg0, %arg1 : i32, i32
  }
}

</mosaic_0001>

<llo_original>
// kernel: tpu_custom_call.1
$region0: #{tpu_custom_call.1}
  #allocation0 [shape = 'u32[]', space=smem, size = 0x4, offset = 0x4, fixed_abs, tag = 'smem constant byte address 0x4 - core index']
  #allocation1 [shape = 'u32[72,128]{1,0:T(1,128)}', space=vmem, size = 0x9000, scoped, tag = 'internal scratch']
  #allocation2 [shape = 'f32[1,1]{1,0:T(1,128)S(6)}', space=smem, size = 0x200, scoped, tag = 'scoped memory for tpu_custom_call.1']
  %s0 = inlined_call_operand.hbm [shape: s8[16,16,16], index: 0, kind: input, shape index: {}]
  %s1 = inlined_call_operand.hbm [shape: f32[16,16,33], index: 1, kind: input, shape index: {}]
  %s2 = inlined_call_operand.hbm [shape: f32[32,32], index: 2, kind: input, shape index: {}]
  %s3 = inlined_call_operand.vmem [shape: f32[1,32], index: 3, kind: input, shape index: {}]
  %s4 = inlined_call_operand.vmem [shape: f32[1,32], index: 4, kind: input, shape index: {}]
  %s5 = inlined_call_operand.<no memory space> [shape: f32[1,1], index: 5, kind: input, shape index: {}]
  %s6 = inlined_call_operand.hbm [shape: f32[16,16], index: 6, kind: output, shape index: {}]
  %s7 = sld [smem:[#allocation0]]
  $region69: #{tpu_custom_call.1} parent=0
    _
  %s9 = ssub.s32 1, %s7
  %s10 = scalar_select 0, %s9, %s7
  %11 = sst [smem:[#allocation2]] %s5
  $region1: #{tpu_custom_call.1} parent=0
    #allocation3 [shape = 'u8[32768]{0}', space=vmem, size = 0x8000, scoped, tag = 'input window, operand 0']
    #allocation4 [shape = 's32[2]{0}', space=sflag, size = 0x8, scoped, tag = 'scoped memory for tpu_custom_call.1']
    #allocation5 [shape = 's32[2]{0}', space=sflag, size = 0x8, scoped, tag = 'scoped memory for tpu_custom_call.1']
    #allocation6 [shape = 'u8[131072]{0}', space=vmem, size = 0x20000, scoped, tag = 'input window, operand 1']
    #allocation7 [shape = 's32[2]{0}', space=sflag, size = 0x8, scoped, tag = 'scoped memory for tpu_custom_call.1']
    #allocation8 [shape = 'u8[16384]{0}', space=vmem, size = 0x4000, scoped, tag = 'input window, operand 2, single buffered']
    #allocation9 [shape = 'u8[8192]{0}', space=vmem, size = 0x2000, scoped, tag = 'output window, operand 0']
    %12 = vsyncpa [#allocation4], 0
    %s13 = scalar_lea.sflag [#allocation4], 1
    %14 = vsyncpa %s13, 0
    %15 = vsyncpa [#allocation7], 0
    %s16 = scalar_lea.sflag [#allocation7], 1
    %17 = vsyncpa %s16, 0
    %18 = vsyncpa [#allocation5], 0
    %s19 = scalar_lea.sflag [#allocation5], 1
    %20 = vsyncpa %s19, 0
    loop: start=0, step=1, limit=4
    $region2: #{tpu_custom_call.1} parent=1 // loop_pre_header
      _
    $region3: #{tpu_custom_call.1} parent=1 // loop_header
      %s22 = sphi 0, %s26
      %p23 = scmp.ge.s32.totalorder %s22, 4
      %s29 = sphi 0, %s41
      %s30 = sphi 0, %s37
      %s31 = sphi 0, %s29
      %s32 = sphi 0, %s30
      %s33 = sphi 0, %s31
      %s34 = sphi 0, %s32
      %s46 = sphi 0, %s48
      %s49 = sphi 0, %s46
      %s50 = sphi 0, %s49
      %s66 = sphi 0, %s50
      %s72 = sphi 0, %s74
      %s75 = sphi 0, %s72
      %s76 = sphi 0, %s75
      %s92 = sphi 0, %s76
      %s96 = sphi 0, %s96
      %s98 = sphi 0, %s96
      %s99 = sphi 0, %s98
      %s113 = sphi 0, %s99
      %s117 = sphi 0, %s117
      %s119 = sphi 0, %s117
      %s120 = sphi 0, %s119
      %s134 = sphi 0, %s120
      %s138 = sphi 0, %s138
      %s140 = sphi 0, %s138
      %s141 = sphi 0, %s140
      %s155 = sphi 0, %s141
      %s159 = sphi 0, %s159
      %s161 = sphi 0, %s159
      %s162 = sphi 0, %s161
      %s176 = sphi 0, %s162
      %s184 = sphi 0, %s186
      %s187 = sphi 0, %s184
      %s188 = sphi 0, %s187
      %s204 = sphi 0, %s188
    $region4: #{tpu_custom_call.1} parent=1 // loop_header_branch
      %25 = sbr.rel (%p23) target = $region8
    $region5: #{tpu_custom_call.1} parent=1 // loop_body
      %s27 = ssub.s32 %s22, 1
      %s28 = ssub.s32 %s22, 2
      %s35 = sadd.s32 1, %s30
      %p36 = scmp.ge.s32.totalorder %s35, 1
      %s37 = scalar_select %p36, 0, %s35
      %s38 = sadd.s32 1, %s29
      %s39 = scalar_select %p36, %s38, %s29
      %p40 = scmp.ge.s32.totalorder %s39, 2
      %s41 = scalar_select %p40, 0, %s39
      %s42 = ssub.s32 %s29, %s41
      %s43 = ssub.s32 %s30, %s37
      %s44 = sor.u32 %s42, %s43
      %p45 = scmp.eq.s32.totalorder %s44, 0
      %s47 = sadd.s32 %s46, 1
      %s48 = scalar_select %p45, %s46, %s47
      %p51 = pneg %p45
      %p52 = scmp.eq.s32.totalorder %s22, 1
      %p53 = por %p51, %p52
      %p54 = scmp.ne.s32.totalorder %s46, %s49
      %p55 = scmp.eq.s32.totalorder %s22, 0
      %p56 = por %p54, %p55
      %p57 = scmp.ne.s32.totalorder %s46, %s49
      %p58 = scmp.eq.s32.totalorder %s27, 1
      %p59 = por %p57, %p58
      %p60 = scmp.ne.s32.totalorder %s49, %s50
      %p61 = scmp.eq.s32.totalorder %s27, 0
      %p62 = por %p60, %p61
      %p63 = scmp.ne.s32.totalorder %s49, %s50
      %p64 = scmp.eq.s32.totalorder %s28, 1
      %p65 = por %p63, %p64
      %p67 = scmp.ne.s32.totalorder %s50, %s66
      %p68 = scmp.eq.s32.totalorder %s28, 0
      %p69 = por %p67, %p68
      %s70 = ssub.s32 %s29, %s41
      %p71 = scmp.eq.s32.totalorder %s70, 0
      %s73 = sadd.s32 %s72, 1
      %s74 = scalar_select %p71, %s72, %s73
      %p77 = pneg %p71
      %p78 = scmp.eq.s32.totalorder %s22, 1
      %p79 = por %p77, %p78
      %p80 = scmp.ne.s32.totalorder %s72, %s75
      %p81 = scmp.eq.s32.totalorder %s22, 0
      %p82 = por %p80, %p81
      %p83 = scmp.ne.s32.totalorder %s72, %s75
      %p84 = scmp.eq.s32.totalorder %s27, 1
      %p85 = por %p83, %p84
      %p86 = scmp.ne.s32.totalorder %s75, %s76
      %p87 = scmp.eq.s32.totalorder %s27, 0
      %p88 = por %p86, %p87
      %p89 = scmp.ne.s32.totalorder %s75, %s76
      %p90 = scmp.eq.s32.totalorder %s28, 1
      %p91 = por %p89, %p90
      %p93 = scmp.ne.s32.totalorder %s76, %s92
      %p94 = scmp.eq.s32.totalorder %s28, 0
      %p95 = por %p93, %p94
      %s97 = sadd.s32 %s96, 1
      %p100 = scmp.eq.s32.totalorder %s22, 1
      %p101 = scmp.ne.s32.totalorder %s96, %s98
      %p102 = scmp.eq.s32.totalorder %s22, 0
      %p103 = por %p101, %p102
      %p104 = scmp.ne.s32.totalorder %s96, %s98
      %p105 = scmp.eq.s32.totalorder %s27, 1
      %p106 = por %p104, %p105
      %p107 = scmp.ne.s32.totalorder %s98, %s99
      %p108 = scmp.eq.s32.totalorder %s27, 0
      %p109 = por %p107, %p108
      %p110 = scmp.ne.s32.totalorder %s98, %s99
      %p111 = scmp.eq.s32.totalorder %s28, 1
      %p112 = por %p110, %p111
      %p114 = scmp.ne.s32.totalorder %s99, %s113
      %p115 = scmp.eq.s32.totalorder %s28, 0
      %p116 = por %p114, %p115
      %s118 = sadd.s32 %s117, 1
      %p121 = scmp.eq.s32.totalorder %s22, 1
      %p122 = scmp.ne.s32.totalorder %s117, %s119
      %p123 = scmp.eq.s32.totalorder %s22, 0
      %p124 = por %p122, %p123
      %p125 = scmp.ne.s32.totalorder %s117, %s119
      %p126 = scmp.eq.s32.totalorder %s27, 1
      %p127 = por %p125, %p126
      %p128 = scmp.ne.s32.totalorder %s119, %s120
      %p129 = scmp.eq.s32.totalorder %s27, 0
      %p130 = por %p128, %p129
      %p131 = scmp.ne.s32.totalorder %s119, %s120
      %p132 = scmp.eq.s32.totalorder %s28, 1
      %p133 = por %p131, %p132
      %p135 = scmp.ne.s32.totalorder %s120, %s134
      %p136 = scmp.eq.s32.totalorder %s28, 0
      %p137 = por %p135, %p136
      %s139 = sadd.s32 %s138, 1
      %p142 = scmp.eq.s32.totalorder %s22, 1
      %p143 = scmp.ne.s32.totalorder %s138, %s140
      %p144 = scmp.eq.s32.totalorder %s22, 0
      %p145 = por %p143, %p144
      %p146 = scmp.ne.s32.totalorder %s138, %s140
      %p147 = scmp.eq.s32.totalorder %s27, 1
      %p148 = por %p146, %p147
      %p149 = scmp.ne.s32.totalorder %s140, %s141
      %p150 = scmp.eq.s32.totalorder %s27, 0
      %p151 = por %p149, %p150
      %p152 = scmp.ne.s32.totalorder %s140, %s141
      %p153 = scmp.eq.s32.totalorder %s28, 1
      %p154 = por %p152, %p153
      %p156 = scmp.ne.s32.totalorder %s141, %s155
      %p157 = scmp.eq.s32.totalorder %s28, 0
      %p158 = por %p156, %p157
      %s160 = sadd.s32 %s159, 1
      %p163 = scmp.eq.s32.totalorder %s22, 1
      %p164 = scmp.ne.s32.totalorder %s159, %s161
      %p165 = scmp.eq.s32.totalorder %s22, 0
      %p166 = por %p164, %p165
      %p167 = scmp.ne.s32.totalorder %s159, %s161
      %p168 = scmp.eq.s32.totalorder %s27, 1
      %p169 = por %p167, %p168
      %p170 = scmp.ne.s32.totalorder %s161, %s162
      %p171 = scmp.eq.s32.totalorder %s27, 0
      %p172 = por %p170, %p171
      %p173 = scmp.ne.s32.totalorder %s161, %s162
      %p174 = scmp.eq.s32.totalorder %s28, 1
      %p175 = por %p173, %p174
      %p177 = scmp.ne.s32.totalorder %s162, %s176
      %p178 = scmp.eq.s32.totalorder %s28, 0
      %p179 = por %p177, %p178
      %s180 = ssub.s32 %s29, %s41
      %s181 = ssub.s32 %s30, %s37
      %s182 = sor.u32 %s180, %s181
      %p183 = scmp.eq.s32.totalorder %s182, 0
      %s185 = sadd.s32 %s184, 1
      %s186 = scalar_select %p183, %s184, %s185
      %p189 = pneg %p183
      %p190 = scmp.eq.s32.totalorder %s22, 1
      %p191 = por %p189, %p190
      %p192 = scmp.ne.s32.totalorder %s184, %s187
      %p193 = scmp.eq.s32.totalorder %s22, 0
      %p194 = por %p192, %p193
      %p195 = scmp.ne.s32.totalorder %s184, %s187
      %p196 = scmp.eq.s32.totalorder %s27, 1
      %p197 = por %p195, %p196
      %p198 = scmp.ne.s32.totalorder %s187, %s188
      %p199 = scmp.eq.s32.totalorder %s27, 0
      %p200 = por %p198, %p199
      %p201 = scmp.ne.s32.totalorder %s187, %s188
      %p202 = scmp.eq.s32.totalorder %s28, 1
      %p203 = por %p201, %p202
      %p205 = scmp.ne.s32.totalorder %s188, %s204
      %p206 = scmp.eq.s32.totalorder %s28, 0
      %p207 = por %p205, %p206
      %p208 = scmp.le.s32.totalorder 1, %s22
      %p209 = scmp.lt.s32.totalorder %s22, 3
      %p210 = pnand %p208, %p209
      %p211 = pneg %p210
      // Predicated region
      $region9: #{tpu_custom_call.1} parent=5 // pred_check
        _
      $region10: #{tpu_custom_call.1} parent=5 // pred_check_branch
        %213 = sbr.rel (%p210) target = $region12
      $region11: #{tpu_custom_call.1} parent=5 // pred_region
        %s214 = ssub.s32 %s22, 1
        // Predicated region
        $region13: #{tpu_custom_call.1} parent=11 // pred_check
          %p215 = pneg %p109
        $region14: #{tpu_custom_call.1} parent=11 // pred_check_branch
          %217 = sbr.rel (%p215) target = $region16
        $region15: #{tpu_custom_call.1} parent=11 // pred_region
          %219 = vsyncadd [#allocation7], 0
          %s220 = sshll.u32 %s2, 4
          %s221 = int_to_ptr.hbm [resolvable:$true] %s220
          %s222 = sshll.u32 [#allocation8], 4
          %s223 = int_to_ptr.vmem [resolvable:$true] %s222
          %228 = dma.hbm_to_vmem [thread:$0]  %s221, 512, %s223, [#allocation7], 128, 128, 8
        $region16: #{tpu_custom_call.1} parent=11 // pred_fallthru
          _
        // Predicated region
        $region17: #{tpu_custom_call.1} parent=11 // pred_check
          %p229 = pneg %p130
        $region18: #{tpu_custom_call.1} parent=11 // pred_check_branch
          %231 = sbr.rel (%p229) target = $region20
        $region19: #{tpu_custom_call.1} parent=11 // pred_region
          _
        $region20: #{tpu_custom_call.1} parent=11 // pred_fallthru
          _
        // Predicated region
        $region21: #{tpu_custom_call.1} parent=11 // pred_check
          %p232 = pneg %p151
        $region22: #{tpu_custom_call.1} parent=11 // pred_check_branch
          %234 = sbr.rel (%p232) target = $region24
        $region23: #{tpu_custom_call.1} parent=11 // pred_region
          _
        $region24: #{tpu_custom_call.1} parent=11 // pred_fallthru
          _
        // Predicated region
        $region25: #{tpu_custom_call.1} parent=11 // pred_check
          %p235 = pneg %p172
        $region26: #{tpu_custom_call.1} parent=11 // pred_check_branch
          %237 = sbr.rel (%p235) target = $region28
        $region27: #{tpu_custom_call.1} parent=11 // pred_region
          _
        $region28: #{tpu_custom_call.1} parent=11 // pred_fallthru
          _
      $region12: #{tpu_custom_call.1} parent=5 // pred_fallthru
        _
      %p238 = scmp.lt.s32.totalorder %s22, 2
      // Predicated region
      $region29: #{tpu_custom_call.1} parent=5 // pred_check
        %p239 = pneg %p238
      $region30: #{tpu_custom_call.1} parent=5 // pred_check_branch
        %241 = sbr.rel (%p239) target = $region32
      $region31: #{tpu_custom_call.1} parent=5 // pred_region
        // Predicated region
        $region33: #{tpu_custom_call.1} parent=31 // pred_check
          %p242 = pneg %p56
        $region34: #{tpu_custom_call.1} parent=31 // pred_check_branch
          %244 = sbr.rel (%p242) target = $region36
        $region35: #{tpu_custom_call.1} parent=31 // pred_region
          %s245 = sand.u32 %s46, 1
          %s246 = scalar_lea.sflag [#allocation4], %s245
          %s247 = sand.u32 %s46, 1
          %s248 = smul.addr %s247, 32
          %s249 = scalar_lea.vmem [#allocation3], %s248
          %s250 = smul.u32 8, %s29
          %s251 = smul.u32 2, %s30
          %253 = vsyncadd %s246, 0
          %s254 = smul.addr %s250, 2
          %s255 = sadd.s32 %s251, %s254
          %s256 = smul.addr %s255, 2
          %s257 = scalar_lea.hbm %s0, %s256
          %s258 = sshll.u32 %s257, 4
          %s259 = int_to_ptr.hbm [resolvable:$true] %s258
          %s260 = sshll.u32 %s249, 4
          %s261 = int_to_ptr.vmem [resolvable:$true] %s260
          %266 = dma.hbm_to_vmem [thread:$0]  %s259, 512, %s261, %s246, 32, 32, 2
        $region36: #{tpu_custom_call.1} parent=31 // pred_fallthru
          _
        // Predicated region
        $region37: #{tpu_custom_call.1} parent=31 // pred_check
          %p267 = pneg %p82
        $region38: #{tpu_custom_call.1} parent=31 // pred_check_branch
          %269 = sbr.rel (%p267) target = $region40
        $region39: #{tpu_custom_call.1} parent=31 // pred_region
          %s270 = sand.u32 %s22, 1
          %s271 = scalar_lea.sflag [#allocation7], %s270
          %s272 = sand.u32 %s72, 1
          %s273 = smul.addr %s272, 128
          %s274 = scalar_lea.vmem [#allocation6], %s273
          %s275 = smul.u32 8, %s29
          %277 = vsyncadd %s271, 0
          %s278 = smul.addr %s275, 2
          %s279 = smul.addr %s278, 8
          %s280 = scalar_lea.hbm %s1, %s279
          %s281 = sshll.u32 %s280, 4
          %s282 = int_to_ptr.hbm [resolvable:$true] %s281
          %s283 = sshll.u32 %s274, 4
          %s284 = int_to_ptr.vmem [resolvable:$true] %s283
          %289 = dma.hbm_to_vmem [thread:$0]  %s282, 2048, %s284, %s271, 128, 128, 8
        $region40: #{tpu_custom_call.1} parent=31 // pred_fallthru
          _
      $region32: #{tpu_custom_call.1} parent=5 // pred_fallthru
        _
      %p290 = scmp.le.s32.totalorder 1, %s22
      %p291 = scmp.lt.s32.totalorder %s22, 3
      %p292 = pnand %p290, %p291
      %p293 = pneg %p292
      // Predicated region
      $region41: #{tpu_custom_call.1} parent=5 // pred_check
        _
      $region42: #{tpu_custom_call.1} parent=5 // pred_check_branch
        %295 = sbr.rel (%p292) target = $region44
      $region43: #{tpu_custom_call.1} parent=5 // pred_region
        %s296 = ssub.s32 %s22, 1
        %s297 = sand.u32 %s49, 1
        %s298 = scalar_lea.sflag [#allocation4], %s297
        %s299 = sand.u32 %s49, 1
        %s300 = smul.addr %s299, 32
        %s301 = scalar_lea.vmem [#allocation3], %s300
        // Predicated region
        $region45: #{tpu_custom_call.1} parent=43 // pred_check
          %p302 = pneg %p62
        $region46: #{tpu_custom_call.1} parent=43 // pred_check_branch
          %304 = sbr.rel (%p302) target = $region48
        $region47: #{tpu_custom_call.1} parent=43 // pred_region
          %306 = dma.done %s298, 512
        $region48: #{tpu_custom_call.1} parent=43 // pred_fallthru
          _
        %s307 = sand.u32 %s27, 1
        %s308 = scalar_lea.sflag [#allocation7], %s307
        %s309 = sand.u32 %s75, 1
        %s310 = smul.addr %s309, 128
        %s311 = scalar_lea.vmem [#allocation6], %s310
        // Predicated region
        $region49: #{tpu_custom_call.1} parent=43 // pred_check
          %p312 = pneg %p88
        $region50: #{tpu_custom_call.1} parent=43 // pred_check_branch
          %314 = sbr.rel (%p312) target = $region52
        $region51: #{tpu_custom_call.1} parent=43 // pred_region
          %316 = dma.done %s308, 2048
        $region52: #{tpu_custom_call.1} parent=43 // pred_fallthru
          _
        // Predicated region
        $region53: #{tpu_custom_call.1} parent=43 // pred_check
          %p317 = pneg %p109
        $region54: #{tpu_custom_call.1} parent=43 // pred_check_branch
          %319 = sbr.rel (%p317) target = $region56
        $region55: #{tpu_custom_call.1} parent=43 // pred_region
          %321 = dma.done [#allocation7], 512
        $region56: #{tpu_custom_call.1} parent=43 // pred_fallthru
          _
        %s322 = sand.u32 %s49, 1
        %s323 = scalar_lea.sflag [#allocation4], %s322
        %s324 = sand.u32 %s49, 1
        %s325 = smul.addr %s324, 32
        %s326 = scalar_lea.vmem [#allocation3], %s325
        %p327 = pneg %p62
        %p328 = pneg %p59
        %s329 = sand.u32 %s27, 1
        %s330 = scalar_lea.sflag [#allocation7], %s329
        %s331 = sand.u32 %s75, 1
        %s332 = smul.addr %s331, 128
        %s333 = scalar_lea.vmem [#allocation6], %s332
        %p334 = pneg %p88
        %p335 = pneg %p85
        %p336 = pneg %p109
        %p337 = pneg %p106
        %p338 = pneg %p130
        %p339 = pneg %p127
        %p340 = pneg %p151
        %p341 = pneg %p148
        %p342 = pneg %p172
        %p343 = pneg %p169
        %p344 = pneg %p200
        %p345 = pneg %p197
        %s346 = sand.u32 %s187, 1
        %s347 = scalar_lea.sflag [#allocation5], %s346
        %s348 = sand.u32 %s187, 1
        %s349 = smul.addr %s348, 8
        %s350 = scalar_lea.vmem [#allocation9], %s349
        %s351 = smul.u32 8, %s31
        %s352 = smul.u32 2, %s32
        %s353 = smul.u32 8, %s31
        %s355 = smul.u32 %s32, 16
        %v356 = vld [vmem:[%s301] sm:$0x3]
        %v357 = vld [vmem:[%s301 + $0x2] sm:$0x3]
        %v358 = vld [vmem:[%s301 + $0x4] sm:$0x3]
        %v359 = vld [vmem:[%s301 + $0x6] sm:$0x3]
        %v360 = vld [vmem:[%s301 + $0x8] sm:$0x3]
        %v361 = vld [vmem:[%s301 + $0xa] sm:$0x3]
        %v362 = vld [vmem:[%s301 + $0xc] sm:$0x3]
        %v363 = vld [vmem:[%s301 + $0xe] sm:$0x3]
        %v364 = vld [vmem:[%s301 + $0x10] sm:$0x3]
        %v365 = vld [vmem:[%s301 + $0x12] sm:$0x3]
        %v366 = vld [vmem:[%s301 + $0x14] sm:$0x3]
        %v367 = vld [vmem:[%s301 + $0x16] sm:$0x3]
        %v368 = vld [vmem:[%s301 + $0x18] sm:$0x3]
        %v369 = vld [vmem:[%s301 + $0x1a] sm:$0x3]
        %v370 = vld [vmem:[%s301 + $0x1c] sm:$0x3]
        %v371 = vld [vmem:[%s301 + $0x1e] sm:$0x3]
        %v372 = vunpack.c.0.s8 %v356
        %v373 = vunpack.c.0.s8 %v357
        %v374 = vunpack.c.0.s8 %v358
        %v375 = vunpack.c.0.s8 %v359
        %v376 = vunpack.c.0.s8 %v360
        %v377 = vunpack.c.0.s8 %v361
        %v378 = vunpack.c.0.s8 %v362
        %v379 = vunpack.c.0.s8 %v363
        %v380 = vunpack.c.0.s8 %v364
        %v381 = vunpack.c.0.s8 %v365
        %v382 = vunpack.c.0.s8 %v366
        %v383 = vunpack.c.0.s8 %v367
        %v384 = vunpack.c.0.s8 %v368
        %v385 = vunpack.c.0.s8 %v369
        %v386 = vunpack.c.0.s8 %v370
        %v387 = vunpack.c.0.s8 %v371
        %v388 = vcvt.s32.f32 %v372
        %v389 = vcvt.s32.f32 %v373
        %v390 = vcvt.s32.f32 %v374
        %v391 = vcvt.s32.f32 %v375
        %v392 = vcvt.s32.f32 %v376
        %v393 = vcvt.s32.f32 %v377
        %v394 = vcvt.s32.f32 %v378
        %v395 = vcvt.s32.f32 %v379
        %v396 = vcvt.s32.f32 %v380
        %v397 = vcvt.s32.f32 %v381
        %v398 = vcvt.s32.f32 %v382
        %v399 = vcvt.s32.f32 %v383
        %v400 = vcvt.s32.f32 %v384
        %v401 = vcvt.s32.f32 %v385
        %v402 = vcvt.s32.f32 %v386
        %v403 = vcvt.s32.f32 %v387
        %v404 = vpack.c.bf16 %v388, %v388
        %v405 = vpack.c.bf16 %v389, %v389
        %v406 = vpack.c.bf16 %v390, %v390
        %v407 = vpack.c.bf16 %v391, %v391
        %v408 = vpack.c.bf16 %v392, %v392
        %v409 = vpack.c.bf16 %v393, %v393
        %v410 = vpack.c.bf16 %v394, %v394
        %v411 = vpack.c.bf16 %v395, %v395
        %v412 = vpack.c.bf16 %v396, %v396
        %v413 = vpack.c.bf16 %v397, %v397
        %v414 = vpack.c.bf16 %v398, %v398
        %v415 = vpack.c.bf16 %v399, %v399
        %v416 = vpack.c.bf16 %v400, %v400
        %v417 = vpack.c.bf16 %v401, %v401
        %v418 = vpack.c.bf16 %v402, %v402
        %v419 = vpack.c.bf16 %v403, %v403
        %v420 = vld [vmem:[%s311] sm:$0xff]
        %v421 = vld [vmem:[%s311 + $0x8] sm:$0xff]
        %v422 = vld [vmem:[%s311 + $0x10] sm:$0xff]
        %v423 = vld [vmem:[%s311 + $0x18] sm:$0xff]
        %v424 = vld [vmem:[%s311 + $0x20] sm:$0xff]
        %v425 = vld [vmem:[%s311 + $0x28] sm:$0xff]
        %v426 = vld [vmem:[%s311 + $0x30] sm:$0xff]
        %v427 = vld [vmem:[%s311 + $0x38] sm:$0xff]
        %v428 = vld [vmem:[%s311 + $0x40] sm:$0xff]
        %v429 = vld [vmem:[%s311 + $0x48] sm:$0xff]
        %v430 = vld [vmem:[%s311 + $0x50] sm:$0xff]
        %v431 = vld [vmem:[%s311 + $0x58] sm:$0xff]
        %v432 = vld [vmem:[%s311 + $0x60] sm:$0xff]
        %v433 = vld [vmem:[%s311 + $0x68] sm:$0xff]
        %v434 = vld [vmem:[%s311 + $0x70] sm:$0xff]
        %v435 = vld [vmem:[%s311 + $0x78] sm:$0xff]
        %v436 = vpack.c.bf16 %v420, %v420
        %v437 = vpack.c.bf16 %v421, %v421
        %v438 = vpack.c.bf16 %v422, %v422
        %v439 = vpack.c.bf16 %v423, %v423
        %v440 = vpack.c.bf16 %v424, %v424
        %v441 = vpack.c.bf16 %v425, %v425
        %v442 = vpack.c.bf16 %v426, %v426
        %v443 = vpack.c.bf16 %v427, %v427
        %v444 = vpack.c.bf16 %v428, %v428
        %v445 = vpack.c.bf16 %v429, %v429
        %v446 = vpack.c.bf16 %v430, %v430
        %v447 = vpack.c.bf16 %v431, %v431
        %v448 = vpack.c.bf16 %v432, %v432
        %v449 = vpack.c.bf16 %v433, %v433
        %v450 = vpack.c.bf16 %v434, %v434
        %v451 = vpack.c.bf16 %v435, %v435
        %v454 = vunpack.c.l.b16 %v404
        %v455 = vunpack.c.l.b16 %v405
        %v456 = vpack.c.b16 %v455, %v454
        %v459 = vunpack.c.l.b16 %v436
        %v460 = vunpack.c.l.b16 %v437
        %v461 = vpack.c.b16 %v460, %v459
        %vm463 = vcmask 130048
        %v465 = vsel %vm463, %v456, 0
        %467 = vmatpush.bf16.msra.mxu0 0
        %468 = vmatpush.bf16.msra.mxu0 0
        %469 = vmatpush.bf16.msra.mxu0 0
        %470 = vmatpush.bf16.msra.mxu0 0
        %471 = vmatpush.bf16.msra.mxu0 0
        %472 = vmatpush.bf16.msra.mxu0 0
        %473 = vmatpush.bf16.msra.mxu0 0
        %474 = vmatpush.bf16.msra.mxu0 %v461
        %475 = vmatmul.bf16.gmra.mxu0 %v465
        %v476 = vpop.f32.mrf.mxu0
        %v477 = vadd.f32 0.0, %v476
        %v478 = vpop.f32.mrf.mxu0
        %v479 = vadd.f32 0.0, %v478
        %480 = vdwg.mxu0
        %v483 = vunpack.c.l.b16 %v406
        %v484 = vunpack.c.l.b16 %v407
        %v485 = vpack.c.b16 %v484, %v483
        %v488 = vunpack.c.l.b16 %v438
        %v489 = vunpack.c.l.b16 %v439
        %v490 = vpack.c.b16 %v489, %v488
        %v493 = vsel %vm463, %v485, 0
        %495 = vmatpush.bf16.msra.mxu0 0
        %496 = vmatpush.bf16.msra.mxu0 0
        %497 = vmatpush.bf16.msra.mxu0 0
        %498 = vmatpush.bf16.msra.mxu0 0
        %499 = vmatpush.bf16.msra.mxu0 0
        %500 = vmatpush.bf16.msra.mxu0 0
        %501 = vmatpush.bf16.msra.mxu0 0
        %502 = vmatpush.bf16.msra.mxu0 %v490
        %503 = vmatmul.bf16.gmra.mxu0 %v493
        %v504 = vpop.f32.mrf.mxu0
        %v505 = vadd.f32 0.0, %v504
        %v506 = vpop.f32.mrf.mxu0
        %v507 = vadd.f32 0.0, %v506
        %508 = vdwg.mxu0
        %v511 = vunpack.c.l.b16 %v408
        %v512 = vunpack.c.l.b16 %v409
        %v513 = vpack.c.b16 %v512, %v511
        %v516 = vunpack.c.l.b16 %v440
        %v517 = vunpack.c.l.b16 %v441
        %v518 = vpack.c.b16 %v517, %v516
        %v521 = vsel %vm463, %v513, 0
        %523 = vmatpush.bf16.msra.mxu0 0
        %524 = vmatpush.bf16.msra.mxu0 0
        %525 = vmatpush.bf16.msra.mxu0 0
        %526 = vmatpush.bf16.msra.mxu0 0
        %527 = vmatpush.bf16.msra.mxu0 0
        %528 = vmatpush.bf16.msra.mxu0 0
        %529 = vmatpush.bf16.msra.mxu0 0
        %530 = vmatpush.bf16.msra.mxu0 %v518
        %531 = vmatmul.bf16.gmra.mxu0 %v521
        %v532 = vpop.f32.mrf.mxu0
        %v533 = vadd.f32 0.0, %v532
        %v534 = vpop.f32.mrf.mxu0
        %v535 = vadd.f32 0.0, %v534
        %536 = vdwg.mxu0
        %v539 = vunpack.c.l.b16 %v410
        %v540 = vunpack.c.l.b16 %v411
        %v541 = vpack.c.b16 %v540, %v539
        %v544 = vunpack.c.l.b16 %v442
        %v545 = vunpack.c.l.b16 %v443
        %v546 = vpack.c.b16 %v545, %v544
        %v549 = vsel %vm463, %v541, 0
        %551 = vmatpush.bf16.msra.mxu0 0
        %552 = vmatpush.bf16.msra.mxu0 0
        %553 = vmatpush.bf16.msra.mxu0 0
        %554 = vmatpush.bf16.msra.mxu0 0
        %555 = vmatpush.bf16.msra.mxu0 0
        %556 = vmatpush.bf16.msra.mxu0 0
        %557 = vmatpush.bf16.msra.mxu0 0
        %558 = vmatpush.bf16.msra.mxu0 %v546
        %559 = vmatmul.bf16.gmra.mxu0 %v549
        %v560 = vpop.f32.mrf.mxu0
        %v561 = vadd.f32 0.0, %v560
        %v562 = vpop.f32.mrf.mxu0
        %v563 = vadd.f32 0.0, %v562
        %564 = vdwg.mxu0
        %v567 = vunpack.c.l.b16 %v412
        %v568 = vunpack.c.l.b16 %v413
        %v569 = vpack.c.b16 %v568, %v567
        %v572 = vunpack.c.l.b16 %v444
        %v573 = vunpack.c.l.b16 %v445
        %v574 = vpack.c.b16 %v573, %v572
        %v577 = vsel %vm463, %v569, 0
        %579 = vmatpush.bf16.msra.mxu0 0
        %580 = vmatpush.bf16.msra.mxu0 0
        %581 = vmatpush.bf16.msra.mxu0 0
        %582 = vmatpush.bf16.msra.mxu0 0
        %583 = vmatpush.bf16.msra.mxu0 0
        %584 = vmatpush.bf16.msra.mxu0 0
        %585 = vmatpush.bf16.msra.mxu0 0
        %586 = vmatpush.bf16.msra.mxu0 %v574
        %587 = vmatmul.bf16.gmra.mxu0 %v577
        %v588 = vpop.f32.mrf.mxu0
        %v589 = vadd.f32 0.0, %v588
        %v590 = vpop.f32.mrf.mxu0
        %v591 = vadd.f32 0.0, %v590
        %592 = vdwg.mxu0
        %v595 = vunpack.c.l.b16 %v414
        %v596 = vunpack.c.l.b16 %v415
        %v597 = vpack.c.b16 %v596, %v595
        %v600 = vunpack.c.l.b16 %v446
        %v601 = vunpack.c.l.b16 %v447
        %v602 = vpack.c.b16 %v601, %v600
        %v605 = vsel %vm463, %v597, 0
        %607 = vmatpush.bf16.msra.mxu0 0
        %608 = vmatpush.bf16.msra.mxu0 0
        %609 = vmatpush.bf16.msra.mxu0 0
        %610 = vmatpush.bf16.msra.mxu0 0
        %611 = vmatpush.bf16.msra.mxu0 0
        %612 = vmatpush.bf16.msra.mxu0 0
        %613 = vmatpush.bf16.msra.mxu0 0
        %614 = vmatpush.bf16.msra.mxu0 %v602
        %615 = vmatmul.bf16.gmra.mxu0 %v605
        %v616 = vpop.f32.mrf.mxu0
        %v617 = vadd.f32 0.0, %v616
        %v618 = vpop.f32.mrf.mxu0
        %v619 = vadd.f32 0.0, %v618
        %620 = vdwg.mxu0
        %v623 = vunpack.c.l.b16 %v416
        %v624 = vunpack.c.l.b16 %v417
        %v625 = vpack.c.b16 %v624, %v623
        %v628 = vunpack.c.l.b16 %v448
        %v629 = vunpack.c.l.b16 %v449
        %v630 = vpack.c.b16 %v629, %v628
        %v633 = vsel %vm463, %v625, 0
        %635 = vmatpush.bf16.msra.mxu0 0
        %636 = vmatpush.bf16.msra.mxu0 0
        %637 = vmatpush.bf16.msra.mxu0 0
        %638 = vmatpush.bf16.msra.mxu0 0
        %639 = vmatpush.bf16.msra.mxu0 0
        %640 = vmatpush.bf16.msra.mxu0 0
        %641 = vmatpush.bf16.msra.mxu0 0
        %642 = vmatpush.bf16.msra.mxu0 %v630
        %643 = vmatmul.bf16.gmra.mxu0 %v633
        %v644 = vpop.f32.mrf.mxu0
        %v645 = vadd.f32 0.0, %v644
        %v646 = vpop.f32.mrf.mxu0
        %v647 = vadd.f32 0.0, %v646
        %648 = vdwg.mxu0
        %v651 = vunpack.c.l.b16 %v418
        %v652 = vunpack.c.l.b16 %v419
        %v653 = vpack.c.b16 %v652, %v651
        %v656 = vunpack.c.l.b16 %v450
        %v657 = vunpack.c.l.b16 %v451
        %v658 = vpack.c.b16 %v657, %v656
        %v661 = vsel %vm463, %v653, 0
        %663 = vmatpush.bf16.msra.mxu0 0
        %664 = vmatpush.bf16.msra.mxu0 0
        %665 = vmatpush.bf16.msra.mxu0 0
        %666 = vmatpush.bf16.msra.mxu0 0
        %667 = vmatpush.bf16.msra.mxu0 0
        %668 = vmatpush.bf16.msra.mxu0 0
        %669 = vmatpush.bf16.msra.mxu0 0
        %670 = vmatpush.bf16.msra.mxu0 %v658
        %671 = vmatmul.bf16.gmra.mxu0 %v661
        %v672 = vpop.f32.mrf.mxu0
        %v673 = vadd.f32 0.0, %v672
        %v674 = vpop.f32.mrf.mxu0
        %v675 = vadd.f32 0.0, %v674
        %676 = vdwg.mxu0
        %v677 = vadd.f32 %v477, 1.0
        %v678 = vadd.f32 %v479, 1.0
        %v679 = vadd.f32 %v505, 1.0
        %v680 = vadd.f32 %v507, 1.0
        %v681 = vadd.f32 %v533, 1.0
        %v682 = vadd.f32 %v535, 1.0
        %v683 = vadd.f32 %v561, 1.0
        %v684 = vadd.f32 %v563, 1.0
        %v685 = vadd.f32 %v589, 1.0
        %v686 = vadd.f32 %v591, 1.0
        %v687 = vadd.f32 %v617, 1.0
        %v688 = vadd.f32 %v619, 1.0
        %v689 = vadd.f32 %v645, 1.0
        %v690 = vadd.f32 %v647, 1.0
        %v691 = vadd.f32 %v673, 1.0
        %v692 = vadd.f32 %v675, 1.0
        %s693 = scalar_lea.vmem %s311, %s355 [#allocation6]
        %v694 = vld [vmem:[%s693] sm:$0xff]
        %v695 = vld [vmem:[%s693 + $0x8] sm:$0xff]
        %v696 = vld [vmem:[%s693 + $0x10] sm:$0xff]
        %v697 = vld [vmem:[%s693 + $0x18] sm:$0xff]
        %v698 = vld [vmem:[%s693 + $0x20] sm:$0xff]
        %v699 = vld [vmem:[%s693 + $0x28] sm:$0xff]
        %v700 = vld [vmem:[%s693 + $0x30] sm:$0xff]
        %v701 = vld [vmem:[%s693 + $0x38] sm:$0xff]
        %v702 = vld [vmem:[%s693 + $0x40] sm:$0xff]
        %v703 = vld [vmem:[%s693 + $0x48] sm:$0xff]
        %v704 = vld [vmem:[%s693 + $0x50] sm:$0xff]
        %v705 = vld [vmem:[%s693 + $0x58] sm:$0xff]
        %v706 = vld [vmem:[%s693 + $0x60] sm:$0xff]
        %v707 = vld [vmem:[%s693 + $0x68] sm:$0xff]
        %v708 = vld [vmem:[%s693 + $0x70] sm:$0xff]
        %v709 = vld [vmem:[%s693 + $0x78] sm:$0xff]
        %v710 = vadd.f32 %v477, %v694
        %v711 = vadd.f32 %v479, %v695
        %v712 = vadd.f32 %v505, %v696
        %v713 = vadd.f32 %v507, %v697
        %v714 = vadd.f32 %v533, %v698
        %v715 = vadd.f32 %v535, %v699
        %v716 = vadd.f32 %v561, %v700
        %v717 = vadd.f32 %v563, %v701
        %v718 = vadd.f32 %v589, %v702
        %v719 = vadd.f32 %v591, %v703
        %v720 = vadd.f32 %v617, %v704
        %v721 = vadd.f32 %v619, %v705
        %v722 = vadd.f32 %v645, %v706
        %v723 = vadd.f32 %v647, %v707
        %v724 = vadd.f32 %v673, %v708
        %v725 = vadd.f32 %v675, %v709
        %v726 = vld [vmem:[#allocation8] sm:$0xff]
        %v727 = vld [vmem:[#allocation8 + $0x8] sm:$0xff]
        %v728 = vld [vmem:[#allocation8 + $0x10] sm:$0xff]
        %v729 = vld [vmem:[#allocation8 + $0x18] sm:$0xff]
        %vm730 = vcmask 261120
        %v732 = vsel %vm730, %v710, 0
        %v735 = vsel %vm730, %v711, 0
        %v738 = vsel %vm730, %v712, 0
        %v741 = vsel %vm730, %v713, 0
        %v744 = vsel %vm730, %v714, 0
        %v747 = vsel %vm730, %v715, 0
        %v750 = vsel %vm730, %v716, 0
        %v753 = vsel %vm730, %v717, 0
        %v756 = vsel %vm730, %v718, 0
        %v759 = vsel %vm730, %v719, 0
        %v762 = vsel %vm730, %v720, 0
        %v765 = vsel %vm730, %v721, 0
        %v768 = vsel %vm730, %v722, 0
        %v771 = vsel %vm730, %v723, 0
        %v774 = vsel %vm730, %v724, 0
        %v777 = vsel %vm730, %v725, 0
        %779 = vmatpush.msra.mxu0 0.0
        %780 = vmatpush.msra.mxu0 0.0
        %781 = vmatpush.msra.mxu0 0.0
        %782 = vmatpush.msra.mxu0 0.0
        %783 = vmatpush.msra.mxu0 0.0
        %784 = vmatpush.msra.mxu0 0.0
        %785 = vmatpush.msra.mxu0 0.0
        %786 = vmatpush.msra.mxu0 0.0
        %787 = vmatpush.msra.mxu0 0.0
        %788 = vmatpush.msra.mxu0 0.0
        %789 = vmatpush.msra.mxu0 0.0
        %790 = vmatpush.msra.mxu0 0.0
        %791 = vmatpush.msra.mxu0 %v729
        %792 = vmatpush.msra.mxu0 %v728
        %793 = vmatpush.msra.mxu0 %v727
        %794 = vmatpush.msra.mxu0 %v726
        %795 = vmatmul.f32.gmra.mxu0 %v732
        %v796 = vpop.f32.mrf.mxu0
        %v797 = vadd.f32 0.0, %v796
        %798 = vmatmul.f32.gmra.mxu0 %v735
        %v799 = vpop.f32.mrf.mxu0
        %v800 = vadd.f32 0.0, %v799
        %801 = vmatmul.f32.gmra.mxu0 %v738
        %v802 = vpop.f32.mrf.mxu0
        %v803 = vadd.f32 0.0, %v802
        %804 = vmatmul.f32.gmra.mxu0 %v741
        %v805 = vpop.f32.mrf.mxu0
        %v806 = vadd.f32 0.0, %v805
        %807 = vmatmul.f32.gmra.mxu0 %v744
        %v808 = vpop.f32.mrf.mxu0
        %v809 = vadd.f32 0.0, %v808
        %810 = vmatmul.f32.gmra.mxu0 %v747
        %v811 = vpop.f32.mrf.mxu0
        %v812 = vadd.f32 0.0, %v811
        %813 = vmatmul.f32.gmra.mxu0 %v750
        %v814 = vpop.f32.mrf.mxu0
        %v815 = vadd.f32 0.0, %v814
        %816 = vmatmul.f32.gmra.mxu0 %v753
        %v817 = vpop.f32.mrf.mxu0
        %v818 = vadd.f32 0.0, %v817
        %819 = vmatmul.f32.gmra.mxu0 %v756
        %v820 = vpop.f32.mrf.mxu0
        %v821 = vadd.f32 0.0, %v820
        %822 = vmatmul.f32.gmra.mxu0 %v759
        %v823 = vpop.f32.mrf.mxu0
        %v824 = vadd.f32 0.0, %v823
        %825 = vmatmul.f32.gmra.mxu0 %v762
        %v826 = vpop.f32.mrf.mxu0
        %v827 = vadd.f32 0.0, %v826
        %828 = vmatmul.f32.gmra.mxu0 %v765
        %v829 = vpop.f32.mrf.mxu0
        %v830 = vadd.f32 0.0, %v829
        %831 = vmatmul.f32.gmra.mxu0 %v768
        %v832 = vpop.f32.mrf.mxu0
        %v833 = vadd.f32 0.0, %v832
        %834 = vmatmul.f32.gmra.mxu0 %v771
        %v835 = vpop.f32.mrf.mxu0
        %v836 = vadd.f32 0.0, %v835
        %837 = vmatmul.f32.gmra.mxu0 %v774
        %v838 = vpop.f32.mrf.mxu0
        %v839 = vadd.f32 0.0, %v838
        %840 = vmatmul.f32.gmra.mxu0 %v777
        %v841 = vpop.f32.mrf.mxu0
        %v842 = vadd.f32 0.0, %v841
        %843 = vdwg.mxu0
        %v844 = vld [vmem:[%s3] sm:$0x1]
        %v846 = vperm.slane %v844, 0
        %v848 = vadd.f32 %v797, %v846
        %v849 = vadd.f32 %v800, %v846
        %v850 = vadd.f32 %v803, %v846
        %v851 = vadd.f32 %v806, %v846
        %v852 = vadd.f32 %v809, %v846
        %v853 = vadd.f32 %v812, %v846
        %v854 = vadd.f32 %v815, %v846
        %v855 = vadd.f32 %v818, %v846
        %v856 = vadd.f32 %v821, %v846
        %v857 = vadd.f32 %v824, %v846
        %v858 = vadd.f32 %v827, %v846
        %v859 = vadd.f32 %v830, %v846
        %v860 = vadd.f32 %v833, %v846
        %v861 = vadd.f32 %v836, %v846
        %v862 = vadd.f32 %v839, %v846
        %v863 = vadd.f32 %v842, %v846
        %v864 = vmax.f32 %v848, 0.0
        %v865 = vmax.f32 %v849, 0.0
        %v866 = vmax.f32 %v850, 0.0
        %v867 = vmax.f32 %v851, 0.0
        %v868 = vmax.f32 %v852, 0.0
        %v869 = vmax.f32 %v853, 0.0
        %v870 = vmax.f32 %v854, 0.0
        %v871 = vmax.f32 %v855, 0.0
        %v872 = vmax.f32 %v856, 0.0
        %v873 = vmax.f32 %v857, 0.0
        %v874 = vmax.f32 %v858, 0.0
        %v875 = vmax.f32 %v859, 0.0
        %v876 = vmax.f32 %v860, 0.0
        %v877 = vmax.f32 %v861, 0.0
        %v878 = vmax.f32 %v862, 0.0
        %v879 = vmax.f32 %v863, 0.0
        %v880 = vld [vmem:[%s4] sm:$0x1]
        %v882 = vperm.slane %v880, 0
        %v884 = vmul.f32 %v864, %v882
        %v885 = vmul.f32 %v865, %v882
        %v886 = vmul.f32 %v866, %v882
        %v887 = vmul.f32 %v867, %v882
        %v888 = vmul.f32 %v868, %v882
        %v889 = vmul.f32 %v869, %v882
        %v890 = vmul.f32 %v870, %v882
        %v891 = vmul.f32 %v871, %v882
        %v892 = vmul.f32 %v872, %v882
        %v893 = vmul.f32 %v873, %v882
        %v894 = vmul.f32 %v874, %v882
        %v895 = vmul.f32 %v875, %v882
        %v896 = vmul.f32 %v876, %v882
        %v897 = vmul.f32 %v877, %v882
        %v898 = vmul.f32 %v878, %v882
        %v899 = vmul.f32 %v879, %v882
        %v900 = vsel %vm730, %v884, 0.0
        %901 = vadd.xlane.f32.xlu0 %v900
        %v902 = vpop.xlane.xlu0 %901
        %v903 = vsel %vm730, %v885, 0.0
        %904 = vadd.xlane.f32.xlu0 %v903
        %v905 = vpop.xlane.xlu0 %904
        %v906 = vsel %vm730, %v886, 0.0
        %907 = vadd.xlane.f32.xlu0 %v906
        %v908 = vpop.xlane.xlu0 %907
        %v909 = vsel %vm730, %v887, 0.0
        %910 = vadd.xlane.f32.xlu0 %v909
        %v911 = vpop.xlane.xlu0 %910
        %v912 = vsel %vm730, %v888, 0.0
        %913 = vadd.xlane.f32.xlu0 %v912
        %v914 = vpop.xlane.xlu0 %913
        %v915 = vsel %vm730, %v889, 0.0
        %916 = vadd.xlane.f32.xlu0 %v915
        %v917 = vpop.xlane.xlu0 %916
        %v918 = vsel %vm730, %v890, 0.0
        %919 = vadd.xlane.f32.xlu0 %v918
        %v920 = vpop.xlane.xlu0 %919
        %v921 = vsel %vm730, %v891, 0.0
        %922 = vadd.xlane.f32.xlu0 %v921
        %v923 = vpop.xlane.xlu0 %922
        %v924 = vsel %vm730, %v892, 0.0
        %925 = vadd.xlane.f32.xlu0 %v924
        %v926 = vpop.xlane.xlu0 %925
        %v927 = vsel %vm730, %v893, 0.0
        %928 = vadd.xlane.f32.xlu0 %v927
        %v929 = vpop.xlane.xlu0 %928
        %v930 = vsel %vm730, %v894, 0.0
        %931 = vadd.xlane.f32.xlu0 %v930
        %v932 = vpop.xlane.xlu0 %931
        %v933 = vsel %vm730, %v895, 0.0
        %934 = vadd.xlane.f32.xlu0 %v933
        %v935 = vpop.xlane.xlu0 %934
        %v936 = vsel %vm730, %v896, 0.0
        %937 = vadd.xlane.f32.xlu0 %v936
        %v938 = vpop.xlane.xlu0 %937
        %v939 = vsel %vm730, %v897, 0.0
        %940 = vadd.xlane.f32.xlu0 %v939
        %v941 = vpop.xlane.xlu0 %940
        %v942 = vsel %vm730, %v898, 0.0
        %943 = vadd.xlane.f32.xlu0 %v942
        %v944 = vpop.xlane.xlu0 %943
        %v945 = vsel %vm730, %v899, 0.0
        %946 = vadd.xlane.f32.xlu0 %v945
        %v947 = vpop.xlane.xlu0 %946
        %v948 = vrcp.pop %v677
        %v949 = vrcp.pop %v678
        %v950 = vrcp.pop %v679
        %v951 = vrcp.pop %v680
        %v952 = vrcp.pop %v681
        %v953 = vrcp.pop %v682
        %v954 = vrcp.pop %v683
        %v955 = vrcp.pop %v684
        %v956 = vrcp.pop %v685
        %v957 = vrcp.pop %v686
        %v958 = vrcp.pop %v687
        %v959 = vrcp.pop %v688
        %v960 = vrcp.pop %v689
        %v961 = vrcp.pop %v690
        %v962 = vrcp.pop %v691
        %v963 = vrcp.pop %v692
        %v964 = vmul.f32 %v902, %v948
        %v965 = vmul.f32 %v905, %v949
        %v966 = vmul.f32 %v908, %v950
        %v967 = vmul.f32 %v911, %v951
        %v968 = vmul.f32 %v914, %v952
        %v969 = vmul.f32 %v917, %v953
        %v970 = vmul.f32 %v920, %v954
        %v971 = vmul.f32 %v923, %v955
        %v972 = vmul.f32 %v926, %v956
        %v973 = vmul.f32 %v929, %v957
        %v974 = vmul.f32 %v932, %v958
        %v975 = vmul.f32 %v935, %v959
        %v976 = vmul.f32 %v938, %v960
        %v977 = vmul.f32 %v941, %v961
        %v978 = vmul.f32 %v944, %v962
        %v979 = vmul.f32 %v947, %v963
        %s980 = sld [smem:[#allocation2]]
        %v981 = vstv %s980
        %v982 = vadd.f32 %v964, %v981
        %v983 = vadd.f32 %v965, %v981
        %v984 = vadd.f32 %v966, %v981
        %v985 = vadd.f32 %v967, %v981
        %v986 = vadd.f32 %v968, %v981
        %v987 = vadd.f32 %v969, %v981
        %v988 = vadd.f32 %v970, %v981
        %v989 = vadd.f32 %v971, %v981
        %v990 = vadd.f32 %v972, %v981
        %v991 = vadd.f32 %v973, %v981
        %v992 = vadd.f32 %v974, %v981
        %v993 = vadd.f32 %v975, %v981
        %v994 = vadd.f32 %v976, %v981
        %v995 = vadd.f32 %v977, %v981
        %v996 = vadd.f32 %v978, %v981
        %v997 = vadd.f32 %v979, %v981
        %1014 = vset.pattern.permute.xlu0 32
        %1015 = vperm.xlu0 %1014, %v982
        %v1016 = vpop.permute.xlu0 %1015
        %1017 = vset.pattern.permute.xlu0 32
        %1018 = vperm.xlu0 %1017, %v983
        %v1019 = vpop.permute.xlu0 %1018
        %1020 = vset.pattern.permute.xlu0 32
        %1021 = vperm.xlu0 %1020, %v984
        %v1022 = vpop.permute.xlu0 %1021
        %1023 = vset.pattern.permute.xlu0 32
        %1024 = vperm.xlu0 %1023, %v985
        %v1025 = vpop.permute.xlu0 %1024
        %1026 = vset.pattern.permute.xlu0 32
        %1027 = vperm.xlu0 %1026, %v986
        %v1028 = vpop.permute.xlu0 %1027
        %1029 = vset.pattern.permute.xlu0 32
        %1030 = vperm.xlu0 %1029, %v987
        %v1031 = vpop.permute.xlu0 %1030
        %1032 = vset.pattern.permute.xlu0 32
        %1033 = vperm.xlu0 %1032, %v988
        %v1034 = vpop.permute.xlu0 %1033
        %1035 = vset.pattern.permute.xlu0 32
        %1036 = vperm.xlu0 %1035, %v989
        %v1037 = vpop.permute.xlu0 %1036
        %1038 = vset.pattern.permute.xlu0 32
        %1039 = vperm.xlu0 %1038, %v990
        %v1040 = vpop.permute.xlu0 %1039
        %1041 = vset.pattern.permute.xlu0 32
        %1042 = vperm.xlu0 %1041, %v991
        %v1043 = vpop.permute.xlu0 %1042
        %1044 = vset.pattern.permute.xlu0 32
        %1045 = vperm.xlu0 %1044, %v992
        %v1046 = vpop.permute.xlu0 %1045
        %1047 = vset.pattern.permute.xlu0 32
        %1048 = vperm.xlu0 %1047, %v993
        %v1049 = vpop.permute.xlu0 %1048
        %1050 = vset.pattern.permute.xlu0 32
        %1051 = vperm.xlu0 %1050, %v994
        %v1052 = vpop.permute.xlu0 %1051
        %1053 = vset.pattern.permute.xlu0 32
        %1054 = vperm.xlu0 %1053, %v995
        %v1055 = vpop.permute.xlu0 %1054
        %1056 = vset.pattern.permute.xlu0 32
        %1057 = vperm.xlu0 %1056, %v996
        %v1058 = vpop.permute.xlu0 %1057
        %1059 = vset.pattern.permute.xlu0 32
        %1060 = vperm.xlu0 %1059, %v997
        %v1061 = vpop.permute.xlu0 %1060
        %v1062 = vlaneseq
        %v1063 = vand.u32 %v1062, 127
        %v1064 = vperm.slane %v1016, %v1063
        %v1065 = vadd.s32 %v1063, 4294967288
        %v1066 = vperm.slane %v1019, %v1065
        %vm1067 = vcmask 130112
        %v1068 = vsel %vm1067, %v1066, %v1064
        %v1069 = vperm.slane %v1022, %v1063
        %v1070 = vperm.slane %v1025, %v1065
        %v1071 = vsel %vm1067, %v1070, %v1069
        %v1072 = vperm.slane %v1028, %v1063
        %v1073 = vperm.slane %v1031, %v1065
        %v1074 = vsel %vm1067, %v1073, %v1072
        %v1075 = vperm.slane %v1034, %v1063
        %v1076 = vperm.slane %v1037, %v1065
        %v1077 = vsel %vm1067, %v1076, %v1075
        %v1078 = vperm.slane %v1040, %v1063
        %v1079 = vperm.slane %v1043, %v1065
        %v1080 = vsel %vm1067, %v1079, %v1078
        %v1081 = vperm.slane %v1046, %v1063
        %v1082 = vperm.slane %v1049, %v1065
        %v1083 = vsel %vm1067, %v1082, %v1081
        %v1084 = vperm.slane %v1052, %v1063
        %v1085 = vperm.slane %v1055, %v1065
        %v1086 = vsel %vm1067, %v1085, %v1084
        %v1087 = vperm.slane %v1058, %v1063
        %v1088 = vperm.slane %v1061, %v1065
        %v1089 = vsel %vm1067, %v1088, %v1087
        %vm1090 = vcmask 1041409
        %v1091 = vsel %vm1090, %v1071, %v1068
        %vm1092 = vcmask 1042434
        %v1093 = vsel %vm1092, %v1074, %v1091
        %vm1094 = vcmask 1043459
        %v1095 = vsel %vm1094, %v1077, %v1093
        %vm1096 = vcmask 1044484
        %v1097 = vsel %vm1096, %v1080, %v1095
        %vm1098 = vcmask 1045509
        %v1099 = vsel %vm1098, %v1083, %v1097
        %vm1100 = vcmask 1046534
        %v1101 = vsel %vm1100, %v1086, %v1099
        %vm1102 = vcmask 1047559
        %v1103 = vsel %vm1102, %v1089, %v1101
        %1105 = vst.msk [vmem:[%s350] sm:$0xff] %vm463, %v1103
        %s1106 = sand.u32 %s187, 1
        %s1107 = scalar_lea.sflag [#allocation5], %s1106
        %s1108 = sand.u32 %s187, 1
        %s1109 = smul.addr %s1108, 8
        %s1110 = scalar_lea.vmem [#allocation9], %s1109
        // Predicated region
        $region57: #{tpu_custom_call.1} parent=43 // pred_check
          %p1111 = pneg %p197
        $region58: #{tpu_custom_call.1} parent=43 // pred_check_branch
          %1113 = sbr.rel (%p1111) target = $region60
        $region59: #{tpu_custom_call.1} parent=43 // pred_region
          %1115 = vsyncadd %s1107, 0
          %s1116 = sadd.s32 %s32, %s31
          %s1117 = smul.addr %s1116, 8
          %s1118 = scalar_lea.hbm %s6, %s1117
          %s1120 = sshll.u32 %s1110, 4
          %s1121 = int_to_ptr.vmem [resolvable:$true] %s1120
          %s1122 = sshll.u32 %s1118, 4
          %s1123 = int_to_ptr.hbm [resolvable:$true] %s1122
          %1125 = dma.vmem_to_hbm [thread:$0]  %s1121, 128, %s1123, %s1107
        $region60: #{tpu_custom_call.1} parent=43 // pred_fallthru
          _
      $region44: #{tpu_custom_call.1} parent=5 // pred_fallthru
        _
      %p1126 = scmp.le.s32.totalorder 2, %s22
      // Predicated region
      $region61: #{tpu_custom_call.1} parent=5 // pred_check
        %p1127 = pneg %p1126
      $region62: #{tpu_custom_call.1} parent=5 // pred_check_branch
        %1129 = sbr.rel (%p1127) target = $region64
      $region63: #{tpu_custom_call.1} parent=5 // pred_region
        %s1130 = ssub.s32 %s22, 2
        // Predicated region
        $region65: #{tpu_custom_call.1} parent=63 // pred_check
          %p1131 = pneg %p203
        $region66: #{tpu_custom_call.1} parent=63 // pred_check_branch
          %1133 = sbr.rel (%p1131) target = $region68
        $region67: #{tpu_custom_call.1} parent=63 // pred_region
          %s1134 = sand.u32 %s188, 1
          %s1135 = scalar_lea.sflag [#allocation5], %s1134
          %s1136 = sand.u32 %s188, 1
          %s1137 = smul.addr %s1136, 8
          %s1138 = scalar_lea.vmem [#allocation9], %s1137
          %1140 = dma.done %s1135, 128
        $region68: #{tpu_custom_call.1} parent=63 // pred_fallthru
          _
      $region64: #{tpu_custom_call.1} parent=5 // pred_fallthru
        _
    $region6: #{tpu_custom_call.1} parent=1 // loop_footer
      %s26 = sadd.s32 1, %s22
    $region7: #{tpu_custom_call.1} parent=1 // loop_footer_branch
      %21 = sbr.rel target = $region3
    $region8: #{tpu_custom_call.1} parent=1 // loop_exit
      _
    %1141 = vsyncpa [#allocation4], 1
    %s1142 = scalar_lea.sflag [#allocation4], 1
    %1143 = vsyncpa %s1142, 1
    %1144 = vsyncpa [#allocation7], 1
    %s1145 = scalar_lea.sflag [#allocation7], 1
    %1146 = vsyncpa %s1145, 1
    %1147 = vsyncpa [#allocation5], 1
    %s1148 = scalar_lea.sflag [#allocation5], 1
    %1149 = vsyncpa %s1148, 1

</llo_original>
